<compile_context>
chip_gen: v7x
topology: tpu7x:2x2x1
jax: 0.10.0
libtpu: 0.0.40
codegen_flags: <defaults>
</compile_context>

<pallas_src>
import jax
import jax.numpy as jnp
from jax.experimental import pallas as pl
from jax.experimental.pallas import tpu as pltpu

# ---- module hyper-params (defaults from __init__) ---------------------------
INPUT_DIM = 256
PARAM_DIM = 8
MARKET_IMPORTANCE_DIM = 4
ATTENTION_DIM = 2

D_IN = INPUT_DIM + ATTENTION_DIM               # 258
HID1 = PARAM_DIM * 4                           # 32 (controller hidden / LayerNorm)
HID2 = PARAM_DIM * 2                           # 16 (controller output)
HEAD_OUT = 1 + 1 + MARKET_IMPORTANCE_DIM + 1   # 7 real head columns
HEAD_PAD = HID2                                # heads padded to 16 lanes
LN_EPS = 1e-5

VEC_WIDTH = 128                                # small-parameter slab is (8, 128)
_MAX_ROW_TILE = 512                            # (512,258) f32 in ~1 MB double-buffered


def _choose_row_tile(T):
    """Largest sublane-aligned tile <= _MAX_ROW_TILE; for bigger batches split
    rows as evenly as possible into >=2 grid steps (v7x 2-TC 'parallel' axis)."""
    Tp = pl.cdiv(T, 8) * 8
    if Tp <= _MAX_ROW_TILE:
        return Tp                               # single grid step
    n_steps = pl.cdiv(Tp, _MAX_ROW_TILE)        # >= 2
    return pl.cdiv(pl.cdiv(Tp, n_steps), 8) * 8


def meta_controller_kernel(x_ref, w1_ref, wf_ref, vec_ref, out_ref):
    """One row-tile of the full forward pass; weights stay resident in VMEM."""
    x = x_ref[...]                              # (TILE, 258)
    vecs = vec_ref[...]                         # (8, 128) lane-0-aligned rows
    b1 = vecs[0:1, :HID1]                       # (1, 32)
    gamma = vecs[1:2, :HID1]                    # (1, 32)
    beta = vecs[2:3, :HID1]                     # (1, 32)
    bf = vecs[3:4, :HEAD_PAD]                   # (1, 16)  b2 @ Wh + bh (fused offline)

    # controller[0]: Linear(258 -> 32), single MXU dot (compiler handles K pad)
    h = jnp.dot(x, w1_ref[...], preferred_element_type=jnp.float32) + b1

    # controller[1]: LayerNorm over last dim (biased variance, matches torch)
    mean = jnp.mean(h, axis=-1, keepdims=True)
    var = jnp.mean(jnp.square(h - mean), axis=-1, keepdims=True)
    h = (h - mean) * jax.lax.rsqrt(var + LN_EPS) * gamma + beta

    # controller[2]: ReLU
    h = jnp.maximum(h, 0.0)

    # controller[3] Linear(32->16) + all four heads (16->16) fused offline into
    # ONE (32,16) weight: heads = relu_h @ (W2 @ Wh) + (b2 @ Wh + bh).
    z = jnp.dot(h, wf_ref[...], preferred_element_type=jnp.float32) + bf  # (TILE, 16)

    # shared exp(-|z|) drives both the stable sigmoid and softplus
    ez = jnp.exp(-jnp.abs(z))
    one_p_ez = 1.0 + ez
    sig = jnp.where(z >= 0.0, 1.0, ez) / one_p_ez          # sigmoid(z), no overflow
    sp = jnp.maximum(z, 0.0) + jnp.log1p(ez)                # softplus(z), stable

    col = jax.lax.broadcasted_iota(jnp.int32, z.shape, 1)
    out = jnp.where(col == 0, sig,                                # memory_retention
          jnp.where(col == 1, sp + 1.0,                           # attention_temperature
          jnp.where(col < 2 + MARKET_IMPORTANCE_DIM, sp,          # market_importance
          jnp.where(col == 2 + MARKET_IMPORTANCE_DIM, sig * 2.0,  # volume_weight
                    0.0))))
    out_ref[...] = out                                            # single lane-dense store


@jax.jit
def meta_controller_forward(combined_input, packed):
    """combined_input: (T, D_IN) float32 -- T independent module invocations."""
    T = combined_input.shape[0]
    row_tile = _choose_row_tile(T)
    Tp = pl.cdiv(T, row_tile) * row_tile
    if Tp != T:
        combined_input = jnp.pad(combined_input, ((0, Tp - T), (0, 0)))

    out = pl.pallas_call(
        meta_controller_kernel,
        out_shape=jax.ShapeDtypeStruct((Tp, HEAD_PAD), jnp.float32),
        grid_spec=pltpu.PrefetchScalarGridSpec(
            num_scalar_prefetch=0,
            grid=(Tp // row_tile,),
            in_specs=[
                pl.BlockSpec((row_tile, D_IN), lambda t: (t, 0)),     # inputs stream
                pl.BlockSpec((D_IN, HID1), lambda t: (0, 0)),         # w1 resident
                pl.BlockSpec((HID1, HEAD_PAD), lambda t: (0, 0)),     # fused W2@Wh resident
                pl.BlockSpec((8, VEC_WIDTH), lambda t: (0, 0)),       # biases/LN resident
            ],
            out_specs=pl.BlockSpec((row_tile, HEAD_PAD), lambda t: (t, 0)),
        ),
        compiler_params=pltpu.CompilerParams(
            dimension_semantics=("parallel",)),                       # split steps across TCs
    )(combined_input, packed["w1"], packed["wf"], packed["vecs"])

    out = out[:T]
    s = 2 + MARKET_IMPORTANCE_DIM
    return {
        "memory_retention": out[:, 0:1],
        "attention_temperature": out[:, 1:2],
        "market_importance": out[:, 2:s],
        "volume_weight": out[:, s:s + 1],
    }


def init_params(key):
    """Deterministic synthetic init (PyTorch-Linear-like uniform ranges)."""
    ks = jax.random.split(key, 12)

    def lin(kw, kb, fan_in, fan_out):
        bound = 1.0 / jnp.sqrt(jnp.float32(fan_in))
        w = jax.random.uniform(kw, (fan_in, fan_out), jnp.float32, -bound, bound)
        b = jax.random.uniform(kb, (1, fan_out), jnp.float32, -bound, bound)
        return w, b

    w1, b1 = lin(ks[0], ks[1], D_IN, HID1)
    gamma = jnp.ones((1, HID1), jnp.float32)
    beta = jnp.zeros((1, HID1), jnp.float32)
    w2, b2 = lin(ks[2], ks[3], HID1, HID2)
    w_mem, b_mem = lin(ks[4], ks[5], HID2, 1)
    w_att, b_att = lin(ks[6], ks[7], HID2, 1)
    w_mkt, b_mkt = lin(ks[8], ks[9], HID2, MARKET_IMPORTANCE_DIM)
    w_vol, b_vol = lin(ks[10], ks[11], HID2, 1)
    return {
        "w1": w1, "b1": b1, "gamma": gamma, "beta": beta, "w2": w2, "b2": b2,
        "wh": jnp.concatenate([w_mem, w_att, w_mkt, w_vol], axis=1),   # (HID2, 7)
        "bh": jnp.concatenate([b_mem, b_att, b_mkt, b_vol], axis=1),   # (1, 7)
    }


def pack_params(p):
    """Collapse the 9 tensors into 3 DMA-friendly arrays (once, outside kernel)."""
    wh_pad = jnp.zeros((HID2, HEAD_PAD), jnp.float32).at[:, :HEAD_OUT].set(p["wh"])
    bh_pad = jnp.zeros((1, HEAD_PAD), jnp.float32).at[:, :HEAD_OUT].set(p["bh"])

    # Offline fusion of the last two Linears (no nonlinearity between them).
    # Computed at HIGHEST precision so the kernel matches the unfused math.
    hi = jax.lax.Precision.HIGHEST
    w_fused = jnp.dot(p["w2"], wh_pad, precision=hi)                   # (32, 16)
    b_fused = jnp.dot(p["b2"], wh_pad, precision=hi) + bh_pad          # (1, 16)

    # Small-parameter slab: one (8,128) f32 tile, one parameter per sublane
    # row, every row starting at lane 0 (no lane rotates in the kernel).
    vecs = jnp.zeros((8, VEC_WIDTH), jnp.float32)
    vecs = vecs.at[0, :HID1].set(p["b1"][0])
    vecs = vecs.at[1, :HID1].set(p["gamma"][0])
    vecs = vecs.at[2, :HID1].set(p["beta"][0])
    vecs = vecs.at[3, :HEAD_PAD].set(b_fused[0])
    return {"w1": p["w1"], "wf": w_fused, "vecs": vecs}


def reference_forward(combined_input, p):
    """Pure-JAX reference mirroring the PyTorch module (batched over rows)."""
    h = combined_input @ p["w1"] + p["b1"]
    mean = jnp.mean(h, axis=-1, keepdims=True)
    var = jnp.mean(jnp.square(h - mean), axis=-1, keepdims=True)
    h = (h - mean) / jnp.sqrt(var + LN_EPS) * p["gamma"] + p["beta"]
    h = jax.nn.relu(h)
    f = h @ p["w2"] + p["b2"]
    heads = f @ p["wh"] + p["bh"]
    s = 2 + MARKET_IMPORTANCE_DIM
    return {
        "memory_retention": jax.nn.sigmoid(heads[:, 0:1]),
        "attention_temperature": jax.nn.softplus(heads[:, 1:2]) + 1.0,
        "market_importance": jax.nn.softplus(heads[:, 2:s]),
        "volume_weight": jax.nn.sigmoid(heads[:, s:s + 1]) * 2.0,
    }


if __name__ == "__main__":
    key = jax.random.PRNGKey(0)
    k_param, k_state, k_att = jax.random.split(key, 3)

    params = init_params(k_param)
    packed = pack_params(params)

    # T independent module invocations (each is batch-1 in PyTorch: a
    # system_state row plus its two attention-variance scalars), stacked so one
    # pallas_call amortizes launch/DMA cost and keeps weights resident in VMEM.
    T = 64
    system_state = jax.random.normal(k_state, (T, INPUT_DIM), jnp.float32)
    attention_tensor = jax.random.uniform(k_att, (T, ATTENTION_DIM), jnp.float32)
    combined_input = jnp.concatenate([system_state, attention_tensor], axis=-1)

    out = meta_controller_forward(combined_input, packed)
    jax.block_until_ready(out)

    ref = reference_forward(combined_input, params)
    for name in out:
        assert out[name].shape == ref[name].shape, name
        assert jnp.allclose(out[name], ref[name], atol=1e-5, rtol=1e-5), name

    print("KERNEL_OK")
</pallas_src>

<mosaic_0001>
module attributes {stable_mosaic.version = 11 : i64} {
  func.func @meta_controller_kernel(%arg0: i32, %arg1: memref<64x258xf32, #tpu.memory_space<vmem>>, %arg2: memref<258x32xf32, #tpu.memory_space<vmem>>, %arg3: memref<32x16xf32, #tpu.memory_space<vmem>>, %arg4: memref<8x128xf32, #tpu.memory_space<vmem>>, %arg5: memref<64x16xf32, #tpu.memory_space<vmem>>) attributes {dimension_semantics = [#tpu.dimension_semantics<parallel>], iteration_bounds = array<i64: 1>, scalar_prefetch = 0 : i64, scratch_operands = 0 : i64, tpu.core_type = #tpu.core_type<tc>, window_params = [{transform_indices = @transform_0, window_bounds = array<i64: 64, 258>}, {pipeline_mode = #tpu.pipeline_mode<synchronous>, transform_indices = @transform_1, window_bounds = array<i64: 258, 32>}, {pipeline_mode = #tpu.pipeline_mode<synchronous>, transform_indices = @transform_2, window_bounds = array<i64: 32, 16>}, {pipeline_mode = #tpu.pipeline_mode<synchronous>, transform_indices = @transform_3, window_bounds = array<i64: 8, 128>}, {transform_indices = @transform_4, window_bounds = array<i64: 64, 16>}]} {
    %c0 = arith.constant 0 : index
    %c0_0 = arith.constant 0 : index
    %0 = vector.load %arg1[%c0, %c0_0] : memref<64x258xf32, #tpu.memory_space<vmem>>, vector<64x258xf32>
    %c0_1 = arith.constant 0 : index
    %c0_2 = arith.constant 0 : index
    %1 = vector.load %arg4[%c0_1, %c0_2] : memref<8x128xf32, #tpu.memory_space<vmem>>, vector<8x128xf32>
    %2 = vector.extract_strided_slice %1 {offsets = [0, 0], sizes = [1, 32], strides = [1, 1]} : vector<8x128xf32> to vector<1x32xf32>
    %3 = vector.extract_strided_slice %1 {offsets = [1, 0], sizes = [1, 32], strides = [1, 1]} : vector<8x128xf32> to vector<1x32xf32>
    %4 = vector.extract_strided_slice %1 {offsets = [2, 0], sizes = [1, 32], strides = [1, 1]} : vector<8x128xf32> to vector<1x32xf32>
    %5 = vector.extract_strided_slice %1 {offsets = [3, 0], sizes = [1, 16], strides = [1, 1]} : vector<8x128xf32> to vector<1x16xf32>
    %c0_3 = arith.constant 0 : index
    %c0_4 = arith.constant 0 : index
    %6 = vector.load %arg2[%c0_3, %c0_4] : memref<258x32xf32, #tpu.memory_space<vmem>>, vector<258x32xf32>
    %cst = arith.constant dense<0.000000e+00> : vector<64x32xf32>
    %7 = tpu.matmul %0, %6, %cst {dimension_numbers = #tpu.dot_dimension_numbers<[1], [0], [0], [1], [0, 0, 1, 1], [], []>} : vector<64x258xf32>, vector<258x32xf32>, vector<64x32xf32> -> vector<64x32xf32>
    %8 = vector.broadcast %2 : vector<1x32xf32> to vector<64x32xf32>
    %9 = arith.addf %7, %8 : vector<64x32xf32>
    %cst_5 = arith.constant dense<0.000000e+00> : vector<64xf32>
    %10 = vector.multi_reduction <add>, %9, %cst_5 [1] : vector<64x32xf32> to vector<64xf32>
    %11 = vector.shape_cast %10 : vector<64xf32> to vector<64x1xf32>
    %cst_6 = arith.constant 3.200000e+01 : f32
    %12 = vector.broadcast %cst_6 : f32 to vector<64x1xf32>
    %13 = arith.divf %11, %12 : vector<64x1xf32>
    %14 = vector.broadcast %13 : vector<64x1xf32> to vector<64x32xf32>
    %15 = arith.subf %9, %14 : vector<64x32xf32>
    %16 = arith.mulf %15, %15 : vector<64x32xf32>
    %cst_7 = arith.constant dense<0.000000e+00> : vector<64xf32>
    %17 = vector.multi_reduction <add>, %16, %cst_7 [1] : vector<64x32xf32> to vector<64xf32>
    %18 = vector.shape_cast %17 : vector<64xf32> to vector<64x1xf32>
    %cst_8 = arith.constant 3.200000e+01 : f32
    %19 = vector.broadcast %cst_8 : f32 to vector<64x1xf32>
    %20 = arith.divf %18, %19 : vector<64x1xf32>
    %21 = vector.broadcast %13 : vector<64x1xf32> to vector<64x32xf32>
    %22 = arith.subf %9, %21 : vector<64x32xf32>
    %cst_9 = arith.constant 9.99999974E-6 : f32
    %23 = vector.broadcast %cst_9 : f32 to vector<64x1xf32>
    %24 = arith.addf %20, %23 : vector<64x1xf32>
    %25 = math.rsqrt %24 : vector<64x1xf32>
    %26 = vector.broadcast %25 : vector<64x1xf32> to vector<64x32xf32>
    %27 = arith.mulf %22, %26 : vector<64x32xf32>
    %28 = vector.broadcast %3 : vector<1x32xf32> to vector<64x32xf32>
    %29 = arith.mulf %27, %28 : vector<64x32xf32>
    %30 = vector.broadcast %4 : vector<1x32xf32> to vector<64x32xf32>
    %31 = arith.addf %29, %30 : vector<64x32xf32>
    %cst_10 = arith.constant 0.000000e+00 : f32
    %32 = vector.broadcast %cst_10 : f32 to vector<64x32xf32>
    %33 = arith.maximumf %31, %32 : vector<64x32xf32>
    %c0_11 = arith.constant 0 : index
    %c0_12 = arith.constant 0 : index
    %34 = vector.load %arg3[%c0_11, %c0_12] : memref<32x16xf32, #tpu.memory_space<vmem>>, vector<32x16xf32>
    %cst_13 = arith.constant dense<0.000000e+00> : vector<64x16xf32>
    %35 = tpu.matmul %33, %34, %cst_13 {dimension_numbers = #tpu.dot_dimension_numbers<[1], [0], [0], [1], [0, 0, 1, 1], [], []>} : vector<64x32xf32>, vector<32x16xf32>, vector<64x16xf32> -> vector<64x16xf32>
    %36 = vector.broadcast %5 : vector<1x16xf32> to vector<64x16xf32>
    %37 = arith.addf %35, %36 : vector<64x16xf32>
    %38 = math.absf %37 : vector<64x16xf32>
    %cst_14 = arith.constant 0.000000e+00 : f32
    %39 = vector.broadcast %cst_14 : f32 to vector<64x16xf32>
    %40 = arith.subf %39, %38 : vector<64x16xf32>
    %41 = math.exp %40 : vector<64x16xf32>
    %cst_15 = arith.constant 1.000000e+00 : f32
    %42 = vector.broadcast %cst_15 : f32 to vector<64x16xf32>
    %43 = arith.addf %42, %41 : vector<64x16xf32>
    %cst_16 = arith.constant 0.000000e+00 : f32
    %44 = vector.broadcast %cst_16 : f32 to vector<64x16xf32>
    %45 = arith.cmpf oge, %37, %44 : vector<64x16xf32>
    %cst_17 = arith.constant 1.000000e+00 : f32
    %46 = vector.broadcast %cst_17 : f32 to vector<64x16xf32>
    %47 = arith.select %45, %46, %41 : vector<64x16xi1>, vector<64x16xf32>
    %48 = arith.divf %47, %43 : vector<64x16xf32>
    %cst_18 = arith.constant 0.000000e+00 : f32
    %49 = vector.broadcast %cst_18 : f32 to vector<64x16xf32>
    %50 = arith.maximumf %37, %49 : vector<64x16xf32>
    %51 = math.log1p %41 : vector<64x16xf32>
    %52 = arith.addf %50, %51 : vector<64x16xf32>
    %53 = tpu.iota {dimensions = array<i32: 1>} : vector<64x16xi32>
    %c0_i32 = arith.constant 0 : i32
    %54 = vector.broadcast %c0_i32 : i32 to vector<64x16xi32>
    %55 = arith.cmpi eq, %53, %54 : vector<64x16xi32>
    %c1_i32 = arith.constant 1 : i32
    %56 = vector.broadcast %c1_i32 : i32 to vector<64x16xi32>
    %57 = arith.cmpi eq, %53, %56 : vector<64x16xi32>
    %cst_19 = arith.constant 1.000000e+00 : f32
    %58 = vector.broadcast %cst_19 : f32 to vector<64x16xf32>
    %59 = arith.addf %52, %58 : vector<64x16xf32>
    %c6_i32 = arith.constant 6 : i32
    %60 = vector.broadcast %c6_i32 : i32 to vector<64x16xi32>
    %61 = arith.cmpi slt, %53, %60 : vector<64x16xi32>
    %c6_i32_20 = arith.constant 6 : i32
    %62 = vector.broadcast %c6_i32_20 : i32 to vector<64x16xi32>
    %63 = arith.cmpi eq, %53, %62 : vector<64x16xi32>
    %cst_21 = arith.constant 2.000000e+00 : f32
    %64 = vector.broadcast %cst_21 : f32 to vector<64x16xf32>
    %65 = arith.mulf %48, %64 : vector<64x16xf32>
    %cst_22 = arith.constant 0.000000e+00 : f32
    %66 = vector.broadcast %cst_22 : f32 to vector<64x16xf32>
    %67 = arith.select %63, %65, %66 : vector<64x16xi1>, vector<64x16xf32>
    %68 = arith.select %61, %52, %67 : vector<64x16xi1>, vector<64x16xf32>
    %69 = arith.select %57, %59, %68 : vector<64x16xi1>, vector<64x16xf32>
    %70 = arith.select %55, %48, %69 : vector<64x16xi1>, vector<64x16xf32>
    %c0_23 = arith.constant 0 : index
    %c0_24 = arith.constant 0 : index
    %71 = vector.load %arg5[%c0_23, %c0_24] : memref<64x16xf32, #tpu.memory_space<vmem>>, vector<64x16xf32>
    tpu.vector_store %arg5[%c0_23, %c0_24], %70 {strides = array<i32>} : memref<64x16xf32, #tpu.memory_space<vmem>>, vector<64x16xf32>,
    return
  }
  func.func @transform_0(%arg0: i32) -> (i32, i32) {
    %c0_i32 = arith.constant 0 : i32
    %c0_i32_0 = arith.constant 0 : i32
    return %arg0, %c0_i32 : i32, i32
  }
  func.func @transform_1(%arg0: i32) -> (i32, i32) {
    %c0_i32 = arith.constant 0 : i32
    %c0_i32_0 = arith.constant 0 : i32
    %c0_i32_1 = arith.constant 0 : i32
    return %c0_i32, %c0_i32_0 : i32, i32
  }
  func.func @transform_2(%arg0: i32) -> (i32, i32) {
    %c0_i32 = arith.constant 0 : i32
    %c0_i32_0 = arith.constant 0 : i32
    %c0_i32_1 = arith.constant 0 : i32
    return %c0_i32, %c0_i32_0 : i32, i32
  }
  func.func @transform_3(%arg0: i32) -> (i32, i32) {
    %c0_i32 = arith.constant 0 : i32
    %c0_i32_0 = arith.constant 0 : i32
    %c0_i32_1 = arith.constant 0 : i32
    return %c0_i32, %c0_i32_0 : i32, i32
  }
  func.func @transform_4(%arg0: i32) -> (i32, i32) {
    %c0_i32 = arith.constant 0 : i32
    %c0_i32_0 = arith.constant 0 : i32
    return %arg0, %c0_i32 : i32, i32
  }
}

</mosaic_0001>

<llo_original>
// kernel: meta_controller_forward.1
$region0: #{meta_controller_forward.1}
  #allocation0 [shape = 'u32[]', space=smem, size = 0x4, offset = 0x4, fixed_abs, tag = 'smem constant byte address 0x4 - core index']
  #allocation1 [shape = 'u32[144,128]{1,0:T(1,128)}', space=vmem, size = 0x12000, scoped, tag = 'internal scratch']
  %s0 = inlined_call_operand.vmem [shape: f32[64,258], index: 0, kind: input, shape index: {}]
  %s1 = inlined_call_operand.vmem [shape: f32[258,32], index: 1, kind: input, shape index: {}]
  %s2 = inlined_call_operand.vmem [shape: f32[32,16], index: 2, kind: input, shape index: {}]
  %s3 = inlined_call_operand.vmem [shape: f32[8,128], index: 3, kind: input, shape index: {}]
  %s4 = inlined_call_operand.vmem [shape: f32[64,16], index: 4, kind: output, shape index: {}]
  %s5 = sld [smem:[#allocation0]]
  $region26: #{meta_controller_forward.1} parent=0
    _
  %s7 = ssub.s32 1, %s5
  %s8 = scalar_select 0, %s7, %s5
  // Predicated region
  $region2: #{meta_controller_forward.1} parent=0 // pred_check
    _
  $region3: #{meta_controller_forward.1} parent=0 // pred_check_branch
    %10 = sbr.rel (0) target = $region5
  $region4: #{meta_controller_forward.1} parent=0 // pred_region
    _
  $region5: #{meta_controller_forward.1} parent=0 // pred_fallthru
    _
  // Predicated region
  $region6: #{meta_controller_forward.1} parent=0 // pred_check
    _
  $region7: #{meta_controller_forward.1} parent=0 // pred_check_branch
    %12 = sbr.rel (0) target = $region9
  $region8: #{meta_controller_forward.1} parent=0 // pred_region
    _
  $region9: #{meta_controller_forward.1} parent=0 // pred_fallthru
    _
  // Predicated region
  $region10: #{meta_controller_forward.1} parent=0 // pred_check
    _
  $region11: #{meta_controller_forward.1} parent=0 // pred_check_branch
    %14 = sbr.rel (0) target = $region13
  $region12: #{meta_controller_forward.1} parent=0 // pred_region
    _
  $region13: #{meta_controller_forward.1} parent=0 // pred_fallthru
    _
  // Predicated region
  $region14: #{meta_controller_forward.1} parent=0 // pred_check
    _
  $region15: #{meta_controller_forward.1} parent=0 // pred_check_branch
    %16 = sbr.rel (0) target = $region17
  $region16: #{meta_controller_forward.1} parent=0 // pred_region
    _
  $region17: #{meta_controller_forward.1} parent=0 // pred_fallthru
    _
  %v17 = vld [vmem:[%s0] sm:$0xff]
  %v18 = vld [vmem:[%s0 + $0x8] sm:$0xff]
  %v19 = vld [vmem:[%s0 + $0x10] sm:$0xff]
  %v20 = vld [vmem:[%s0 + $0x18] sm:$0xff]
  %v21 = vld [vmem:[%s0 + $0x20] sm:$0xff]
  %v22 = vld [vmem:[%s0 + $0x28] sm:$0xff]
  %v23 = vld [vmem:[%s0 + $0x30] sm:$0xff]
  %v24 = vld [vmem:[%s0 + $0x38] sm:$0xff]
  %v25 = vld [vmem:[%s0 + $0x40] sm:$0xff]
  %v26 = vld [vmem:[%s0 + $0x48] sm:$0xff]
  %v27 = vld [vmem:[%s0 + $0x50] sm:$0xff]
  %v28 = vld [vmem:[%s0 + $0x58] sm:$0xff]
  %v29 = vld [vmem:[%s0 + $0x60] sm:$0xff]
  %v30 = vld [vmem:[%s0 + $0x68] sm:$0xff]
  %v31 = vld [vmem:[%s0 + $0x70] sm:$0xff]
  %v32 = vld [vmem:[%s0 + $0x78] sm:$0xff]
  %v33 = vld [vmem:[%s0 + $0x80] sm:$0xff]
  %v34 = vld [vmem:[%s0 + $0x88] sm:$0xff]
  %v35 = vld [vmem:[%s0 + $0x90] sm:$0xff]
  %v36 = vld [vmem:[%s0 + $0x98] sm:$0xff]
  %v37 = vld [vmem:[%s0 + $0xa0] sm:$0xff]
  %v38 = vld [vmem:[%s0 + $0xa8] sm:$0xff]
  %v39 = vld [vmem:[%s0 + $0xb0] sm:$0xff]
  %v40 = vld [vmem:[%s0 + $0xb8] sm:$0xff]
  %v41 = vld [vmem:[%s3] sm:$0xff]
  %v42 = vld [vmem:[%s1] sm:$0xff]
  %v43 = vld [vmem:[%s1 + $0x8] sm:$0xff]
  %v44 = vld [vmem:[%s1 + $0x10] sm:$0xff]
  %v45 = vld [vmem:[%s1 + $0x18] sm:$0xff]
  %v46 = vld [vmem:[%s1 + $0x20] sm:$0xff]
  %v47 = vld [vmem:[%s1 + $0x28] sm:$0xff]
  %v48 = vld [vmem:[%s1 + $0x30] sm:$0xff]
  %v49 = vld [vmem:[%s1 + $0x38] sm:$0xff]
  %v50 = vld [vmem:[%s1 + $0x40] sm:$0xff]
  %v51 = vld [vmem:[%s1 + $0x48] sm:$0xff]
  %v52 = vld [vmem:[%s1 + $0x50] sm:$0xff]
  %v53 = vld [vmem:[%s1 + $0x58] sm:$0xff]
  %v54 = vld [vmem:[%s1 + $0x60] sm:$0xff]
  %v55 = vld [vmem:[%s1 + $0x68] sm:$0xff]
  %v56 = vld [vmem:[%s1 + $0x70] sm:$0xff]
  %v57 = vld [vmem:[%s1 + $0x78] sm:$0xff]
  %v58 = vld [vmem:[%s1 + $0x80] sm:$0xff]
  %v59 = vld [vmem:[%s1 + $0x88] sm:$0xff]
  %v60 = vld [vmem:[%s1 + $0x90] sm:$0xff]
  %v61 = vld [vmem:[%s1 + $0x98] sm:$0xff]
  %v62 = vld [vmem:[%s1 + $0xa0] sm:$0xff]
  %v63 = vld [vmem:[%s1 + $0xa8] sm:$0xff]
  %v64 = vld [vmem:[%s1 + $0xb0] sm:$0xff]
  %v65 = vld [vmem:[%s1 + $0xb8] sm:$0xff]
  %v66 = vld [vmem:[%s1 + $0xc0] sm:$0xff]
  %v67 = vld [vmem:[%s1 + $0xc8] sm:$0xff]
  %v68 = vld [vmem:[%s1 + $0xd0] sm:$0xff]
  %v69 = vld [vmem:[%s1 + $0xd8] sm:$0xff]
  %v70 = vld [vmem:[%s1 + $0xe0] sm:$0xff]
  %v71 = vld [vmem:[%s1 + $0xe8] sm:$0xff]
  %v72 = vld [vmem:[%s1 + $0xf0] sm:$0xff]
  %v73 = vld [vmem:[%s1 + $0xf8] sm:$0xff]
  %v74 = vld [vmem:[%s1 + $0x100] sm:$0x3]
  %v75 = vlaneseq
  %v76 = vshrl.u32 %v75, 7
  %v77 = vsub.s32 0, %v76
  %v78 = vrot.slane %v41, %v77
  %vm79 = vcmask 15360
  %v81 = vsel %vm79, %v19, 0
  %v84 = vsel %vm79, %v22, 0
  %v87 = vsel %vm79, %v25, 0
  %v90 = vsel %vm79, %v28, 0
  %v93 = vsel %vm79, %v31, 0
  %v96 = vsel %vm79, %v34, 0
  %v99 = vsel %vm79, %v37, 0
  %v102 = vsel %vm79, %v40, 0
  %vm104 = vcmask 1041408
  %v106 = vsel %vm104, %v74, 0
  %108 = vmatprep.subr.mxu0 0.0
  %109 = vmatpush1.msra.mxu0 %v42
  %110 = vmatprep.subr.mxu0 0.0
  %111 = vmatpush1.msra.mxu0 %v43
  %112 = vmatprep.subr.mxu0 0.0
  %113 = vmatpush1.msra.mxu0 %v44
  %114 = vmatprep.subr.mxu0 0.0
  %115 = vmatpush1.msra.mxu0 %v45
  %116 = vmatprep.subr.mxu0 0.0
  %117 = vmatpush1.msra.mxu0 %v46
  %118 = vmatprep.subr.mxu0 0.0
  %119 = vmatpush1.msra.mxu0 %v47
  %120 = vmatprep.subr.mxu0 0.0
  %121 = vmatpush1.msra.mxu0 %v48
  %122 = vmatprep.subr.mxu0 0.0
  %123 = vmatpush1.msra.mxu0 %v49
  %124 = vmatprep.subr.mxu0 0.0
  %125 = vmatpush1.msra.mxu0 %v50
  %126 = vmatprep.subr.mxu0 0.0
  %127 = vmatpush1.msra.mxu0 %v51
  %128 = vmatprep.subr.mxu0 0.0
  %129 = vmatpush1.msra.mxu0 %v52
  %130 = vmatprep.subr.mxu0 0.0
  %131 = vmatpush1.msra.mxu0 %v53
  %132 = vmatprep.subr.mxu0 0.0
  %133 = vmatpush1.msra.mxu0 %v54
  %134 = vmatprep.subr.mxu0 0.0
  %135 = vmatpush1.msra.mxu0 %v55
  %136 = vmatprep.subr.mxu0 0.0
  %137 = vmatpush1.msra.mxu0 %v56
  %138 = vmatprep.subr.mxu0 0.0
  %139 = vmatpush1.msra.mxu0 %v57
  %140 = vmatprep.subr.mxu0 0.0
  %141 = vmatpush1.msra.mxu0 %v58
  %142 = vmatprep.subr.mxu0 0.0
  %143 = vmatpush1.msra.mxu0 %v59
  %144 = vmatprep.subr.mxu0 0.0
  %145 = vmatpush1.msra.mxu0 %v60
  %146 = vmatprep.subr.mxu0 0.0
  %147 = vmatpush1.msra.mxu0 %v61
  %148 = vmatprep.subr.mxu0 0.0
  %149 = vmatpush1.msra.mxu0 %v62
  %150 = vmatprep.subr.mxu0 0.0
  %151 = vmatpush1.msra.mxu0 %v63
  %152 = vmatprep.subr.mxu0 0.0
  %153 = vmatpush1.msra.mxu0 %v64
  %154 = vmatprep.subr.mxu0 0.0
  %155 = vmatpush1.msra.mxu0 %v65
  %156 = vmatprep.subr.mxu0 0.0
  %157 = vmatpush1.msra.mxu0 %v66
  %158 = vmatprep.subr.mxu0 0.0
  %159 = vmatpush1.msra.mxu0 %v67
  %160 = vmatprep.subr.mxu0 0.0
  %161 = vmatpush1.msra.mxu0 %v68
  %162 = vmatprep.subr.mxu0 0.0
  %163 = vmatpush1.msra.mxu0 %v69
  %164 = vmatprep.subr.mxu0 0.0
  %165 = vmatpush1.msra.mxu0 %v70
  %166 = vmatprep.subr.mxu0 0.0
  %167 = vmatpush1.msra.mxu0 %v71
  %168 = vmatprep.subr.mxu0 0.0
  %169 = vmatpush1.msra.mxu0 %v72
  %170 = vmatprep.subr.mxu0 0.0
  %171 = vmatpush1.msra.mxu0 %v73
  %172 = vmatprep.mubr.f32.mxu0 %v18
  %173 = vmatmul.mubr.f32.gmra.mrb[0].mxu0 %v17
  %v174 = vpop.f32.mrb[0].mxu0
  %v175 = vadd.f32 %v78, %v174
  %v176 = vpop.f32.mrb[0].mxu0
  %177 = vmatprep.mubr.f32.mxu0 %v21
  %178 = vmatmul.mubr.f32.gmra.mrb[0].mxu0 %v20
  %v179 = vpop.f32.mrb[0].mxu0
  %v180 = vadd.f32 %v78, %v179
  %v181 = vpop.f32.mrb[0].mxu0
  %182 = vmatprep.mubr.f32.mxu0 %v24
  %183 = vmatmul.mubr.f32.gmra.mrb[0].mxu0 %v23
  %v184 = vpop.f32.mrb[0].mxu0
  %v185 = vadd.f32 %v78, %v184
  %v186 = vpop.f32.mrb[0].mxu0
  %187 = vmatprep.mubr.f32.mxu0 %v27
  %188 = vmatmul.mubr.f32.gmra.mrb[0].mxu0 %v26
  %v189 = vpop.f32.mrb[0].mxu0
  %v190 = vadd.f32 %v78, %v189
  %v191 = vpop.f32.mrb[0].mxu0
  %192 = vmatprep.mubr.f32.mxu0 %v30
  %193 = vmatmul.mubr.f32.gmra.mrb[0].mxu0 %v29
  %v194 = vpop.f32.mrb[0].mxu0
  %v195 = vadd.f32 %v78, %v194
  %v196 = vpop.f32.mrb[0].mxu0
  %197 = vmatprep.mubr.f32.mxu0 %v33
  %198 = vmatmul.mubr.f32.gmra.mrb[0].mxu0 %v32
  %v199 = vpop.f32.mrb[0].mxu0
  %v200 = vadd.f32 %v78, %v199
  %v201 = vpop.f32.mrb[0].mxu0
  %202 = vmatprep.mubr.f32.mxu0 %v36
  %203 = vmatmul.mubr.f32.gmra.mrb[0].mxu0 %v35
  %v204 = vpop.f32.mrb[0].mxu0
  %v205 = vadd.f32 %v78, %v204
  %v206 = vpop.f32.mrb[0].mxu0
  %207 = vmatprep.mubr.f32.mxu0 %v39
  %208 = vmatmul.mubr.f32.gmra.mrb[0].mxu0 %v38
  %v209 = vpop.f32.mrb[0].mxu0
  %v210 = vadd.f32 %v78, %v209
  %v211 = vpop.f32.mrb[0].mxu0
  %212 = vdwg.mxu0
  %213 = vmatprep.subr.mxu0 0.0
  %214 = vmatpush1.msra.mxu0 %v106
  %215 = vmatprep.subr.mxu0 0.0
  %216 = vmatpush1.msra.mxu0 0.0
  %217 = vmatprep.subr.mxu0 0.0
  %218 = vmatpush1.msra.mxu0 0.0
  %219 = vmatprep.subr.mxu0 0.0
  %220 = vmatpush1.msra.mxu0 0.0
  %221 = vmatprep.subr.mxu0 0.0
  %222 = vmatpush1.msra.mxu0 0.0
  %223 = vmatprep.subr.mxu0 0.0
  %224 = vmatpush1.msra.mxu0 0.0
  %225 = vmatprep.subr.mxu0 0.0
  %226 = vmatpush1.msra.mxu0 0.0
  %227 = vmatprep.subr.mxu0 0.0
  %228 = vmatpush1.msra.mxu0 0.0
  %229 = vmatprep.subr.mxu0 0.0
  %230 = vmatpush1.msra.mxu0 0.0
  %231 = vmatprep.subr.mxu0 0.0
  %232 = vmatpush1.msra.mxu0 0.0
  %233 = vmatprep.subr.mxu0 0.0
  %234 = vmatpush1.msra.mxu0 0.0
  %235 = vmatprep.subr.mxu0 0.0
  %236 = vmatpush1.msra.mxu0 0.0
  %237 = vmatprep.subr.mxu0 0.0
  %238 = vmatpush1.msra.mxu0 0.0
  %239 = vmatprep.subr.mxu0 0.0
  %240 = vmatpush1.msra.mxu0 0.0
  %241 = vmatprep.subr.mxu0 0.0
  %242 = vmatpush1.msra.mxu0 0.0
  %243 = vmatprep.subr.mxu0 0.0
  %244 = vmatpush1.msra.mxu0 0.0
  %245 = vmatprep.subr.mxu0 0.0
  %246 = vmatpush1.msra.mxu0 0.0
  %247 = vmatprep.subr.mxu0 0.0
  %248 = vmatpush1.msra.mxu0 0.0
  %249 = vmatprep.subr.mxu0 0.0
  %250 = vmatpush1.msra.mxu0 0.0
  %251 = vmatprep.subr.mxu0 0.0
  %252 = vmatpush1.msra.mxu0 0.0
  %253 = vmatprep.subr.mxu0 0.0
  %254 = vmatpush1.msra.mxu0 0.0
  %255 = vmatprep.subr.mxu0 0.0
  %256 = vmatpush1.msra.mxu0 0.0
  %257 = vmatprep.subr.mxu0 0.0
  %258 = vmatpush1.msra.mxu0 0.0
  %259 = vmatprep.subr.mxu0 0.0
  %260 = vmatpush1.msra.mxu0 0.0
  %261 = vmatprep.subr.mxu0 0.0
  %262 = vmatpush1.msra.mxu0 0.0
  %263 = vmatprep.subr.mxu0 0.0
  %264 = vmatpush1.msra.mxu0 0.0
  %265 = vmatprep.subr.mxu0 0.0
  %266 = vmatpush1.msra.mxu0 0.0
  %267 = vmatprep.subr.mxu0 0.0
  %268 = vmatpush1.msra.mxu0 0.0
  %269 = vmatprep.subr.mxu0 0.0
  %270 = vmatpush1.msra.mxu0 0.0
  %271 = vmatprep.subr.mxu0 0.0
  %272 = vmatpush1.msra.mxu0 0.0
  %273 = vmatprep.subr.mxu0 0.0
  %274 = vmatpush1.msra.mxu0 0.0
  %275 = vmatprep.subr.mxu0 0.0
  %276 = vmatpush1.msra.mxu0 0.0
  %277 = vmatprep.mubr.f32.mxu0 0.0
  %278 = vmatmul.mubr.f32.gmra.mrb[0].mxu0 %v81
  %v279 = vpop.f32.mrb[0].mxu0
  %v280 = vadd.f32 %v175, %v279
  %v281 = vpop.f32.mrb[0].mxu0
  %282 = vmatprep.mubr.f32.mxu0 0.0
  %283 = vmatmul.mubr.f32.gmra.mrb[0].mxu0 %v84
  %v284 = vpop.f32.mrb[0].mxu0
  %v285 = vadd.f32 %v180, %v284
  %v286 = vpop.f32.mrb[0].mxu0
  %287 = vmatprep.mubr.f32.mxu0 0.0
  %288 = vmatmul.mubr.f32.gmra.mrb[0].mxu0 %v87
  %v289 = vpop.f32.mrb[0].mxu0
  %v290 = vadd.f32 %v185, %v289
  %v291 = vpop.f32.mrb[0].mxu0
  %292 = vmatprep.mubr.f32.mxu0 0.0
  %293 = vmatmul.mubr.f32.gmra.mrb[0].mxu0 %v90
  %v294 = vpop.f32.mrb[0].mxu0
  %v295 = vadd.f32 %v190, %v294
  %v296 = vpop.f32.mrb[0].mxu0
  %297 = vmatprep.mubr.f32.mxu0 0.0
  %298 = vmatmul.mubr.f32.gmra.mrb[0].mxu0 %v93
  %v299 = vpop.f32.mrb[0].mxu0
  %v300 = vadd.f32 %v195, %v299
  %v301 = vpop.f32.mrb[0].mxu0
  %302 = vmatprep.mubr.f32.mxu0 0.0
  %303 = vmatmul.mubr.f32.gmra.mrb[0].mxu0 %v96
  %v304 = vpop.f32.mrb[0].mxu0
  %v305 = vadd.f32 %v200, %v304
  %v306 = vpop.f32.mrb[0].mxu0
  %307 = vmatprep.mubr.f32.mxu0 0.0
  %308 = vmatmul.mubr.f32.gmra.mrb[0].mxu0 %v99
  %v309 = vpop.f32.mrb[0].mxu0
  %v310 = vadd.f32 %v205, %v309
  %v311 = vpop.f32.mrb[0].mxu0
  %312 = vmatprep.mubr.f32.mxu0 0.0
  %313 = vmatmul.mubr.f32.gmra.mrb[0].mxu0 %v102
  %v314 = vpop.f32.mrb[0].mxu0
  %v315 = vadd.f32 %v210, %v314
  %v316 = vpop.f32.mrb[0].mxu0
  %317 = vdwg.mxu0
  %vm318 = vcmask 261120
  %v319 = vsel %vm318, %v280, 0.0
  %320 = vadd.xlane.f32.xlu0 %v319
  %v321 = vpop.xlane.xlu0 %320
  %v322 = vsel %vm318, %v285, 0.0
  %323 = vadd.xlane.f32.xlu0 %v322
  %v324 = vpop.xlane.xlu0 %323
  %v325 = vsel %vm318, %v290, 0.0
  %326 = vadd.xlane.f32.xlu0 %v325
  %v327 = vpop.xlane.xlu0 %326
  %v328 = vsel %vm318, %v295, 0.0
  %329 = vadd.xlane.f32.xlu0 %v328
  %v330 = vpop.xlane.xlu0 %329
  %v331 = vsel %vm318, %v300, 0.0
  %332 = vadd.xlane.f32.xlu0 %v331
  %v333 = vpop.xlane.xlu0 %332
  %v334 = vsel %vm318, %v305, 0.0
  %335 = vadd.xlane.f32.xlu0 %v334
  %v336 = vpop.xlane.xlu0 %335
  %v337 = vsel %vm318, %v310, 0.0
  %338 = vadd.xlane.f32.xlu0 %v337
  %v339 = vpop.xlane.xlu0 %338
  %v340 = vsel %vm318, %v315, 0.0
  %341 = vadd.xlane.f32.xlu0 %v340
  %v342 = vpop.xlane.xlu0 %341
  %v343 = vrcp.pop 32.0
  %v344 = vmul.f32 %v321, %v343
  %v345 = vmul.f32 %v324, %v343
  %v346 = vmul.f32 %v327, %v343
  %v347 = vmul.f32 %v330, %v343
  %v348 = vmul.f32 %v333, %v343
  %v349 = vmul.f32 %v336, %v343
  %v350 = vmul.f32 %v339, %v343
  %v351 = vmul.f32 %v342, %v343
  %v352 = vsub.f32 %v280, %v344
  %v353 = vsub.f32 %v285, %v345
  %v354 = vsub.f32 %v290, %v346
  %v355 = vsub.f32 %v295, %v347
  %v356 = vsub.f32 %v300, %v348
  %v357 = vsub.f32 %v305, %v349
  %v358 = vsub.f32 %v310, %v350
  %v359 = vsub.f32 %v315, %v351
  %v360 = vmul.f32 %v352, %v352
  %v361 = vmul.f32 %v353, %v353
  %v362 = vmul.f32 %v354, %v354
  %v363 = vmul.f32 %v355, %v355
  %v364 = vmul.f32 %v356, %v356
  %v365 = vmul.f32 %v357, %v357
  %v366 = vmul.f32 %v358, %v358
  %v367 = vmul.f32 %v359, %v359
  %v368 = vsel %vm318, %v360, 0.0
  %369 = vadd.xlane.f32.xlu0 %v368
  %v370 = vpop.xlane.xlu0 %369
  %v371 = vsel %vm318, %v361, 0.0
  %372 = vadd.xlane.f32.xlu0 %v371
  %v373 = vpop.xlane.xlu0 %372
  %v374 = vsel %vm318, %v362, 0.0
  %375 = vadd.xlane.f32.xlu0 %v374
  %v376 = vpop.xlane.xlu0 %375
  %v377 = vsel %vm318, %v363, 0.0
  %378 = vadd.xlane.f32.xlu0 %v377
  %v379 = vpop.xlane.xlu0 %378
  %v380 = vsel %vm318, %v364, 0.0
  %381 = vadd.xlane.f32.xlu0 %v380
  %v382 = vpop.xlane.xlu0 %381
  %v383 = vsel %vm318, %v365, 0.0
  %384 = vadd.xlane.f32.xlu0 %v383
  %v385 = vpop.xlane.xlu0 %384
  %v386 = vsel %vm318, %v366, 0.0
  %387 = vadd.xlane.f32.xlu0 %v386
  %v388 = vpop.xlane.xlu0 %387
  %v389 = vsel %vm318, %v367, 0.0
  %390 = vadd.xlane.f32.xlu0 %v389
  %v391 = vpop.xlane.xlu0 %390
  %v392 = vmul.f32 %v370, %v343
  %v393 = vmul.f32 %v373, %v343
  %v394 = vmul.f32 %v376, %v343
  %v395 = vmul.f32 %v379, %v343
  %v396 = vmul.f32 %v382, %v343
  %v397 = vmul.f32 %v385, %v343
  %v398 = vmul.f32 %v388, %v343
  %v399 = vmul.f32 %v391, %v343
  %v400 = vadd.f32 %v392, 1e-05
  %v401 = vadd.f32 %v393, 1e-05
  %v402 = vadd.f32 %v394, 1e-05
  %v403 = vadd.f32 %v395, 1e-05
  %v404 = vadd.f32 %v396, 1e-05
  %v405 = vadd.f32 %v397, 1e-05
  %v406 = vadd.f32 %v398, 1e-05
  %v407 = vadd.f32 %v399, 1e-05
  %v408 = vrsqrt.pop %v400
  %v409 = vrsqrt.pop %v401
  %v410 = vrsqrt.pop %v402
  %v411 = vrsqrt.pop %v403
  %v412 = vrsqrt.pop %v404
  %v413 = vrsqrt.pop %v405
  %v414 = vrsqrt.pop %v406
  %v415 = vrsqrt.pop %v407
  %v416 = vmul.f32 %v352, %v408
  %v417 = vmul.f32 %v353, %v409
  %v418 = vmul.f32 %v354, %v410
  %v419 = vmul.f32 %v355, %v411
  %v420 = vmul.f32 %v356, %v412
  %v421 = vmul.f32 %v357, %v413
  %v422 = vmul.f32 %v358, %v414
  %v423 = vmul.f32 %v359, %v415
  %v424 = vlaneseq
  %v425 = vshrl.u32 %v424, 7
  %v426 = vsub.s32 1, %v425
  %v427 = vrot.slane %v41, %v426
  %v428 = vmul.f32 %v416, %v427
  %v429 = vmul.f32 %v417, %v427
  %v430 = vmul.f32 %v418, %v427
  %v431 = vmul.f32 %v419, %v427
  %v432 = vmul.f32 %v420, %v427
  %v433 = vmul.f32 %v421, %v427
  %v434 = vmul.f32 %v422, %v427
  %v435 = vmul.f32 %v423, %v427
  %v436 = vlaneseq
  %v437 = vshrl.u32 %v436, 7
  %v438 = vsub.s32 2, %v437
  %v439 = vrot.slane %v41, %v438
  %v440 = vadd.f32 %v428, %v439
  %v441 = vadd.f32 %v429, %v439
  %v442 = vadd.f32 %v430, %v439
  %v443 = vadd.f32 %v431, %v439
  %v444 = vadd.f32 %v432, %v439
  %v445 = vadd.f32 %v433, %v439
  %v446 = vadd.f32 %v434, %v439
  %v447 = vadd.f32 %v435, %v439
  %v448 = vmax.f32 %v440, 0.0
  %v449 = vmax.f32 %v441, 0.0
  %v450 = vmax.f32 %v442, 0.0
  %v451 = vmax.f32 %v443, 0.0
  %v452 = vmax.f32 %v444, 0.0
  %v453 = vmax.f32 %v445, 0.0
  %v454 = vmax.f32 %v446, 0.0
  %v455 = vmax.f32 %v447, 0.0
  %v456 = vld [vmem:[%s2] sm:$0xff]
  %v457 = vld [vmem:[%s2 + $0x8] sm:$0xff]
  %v458 = vld [vmem:[%s2 + $0x10] sm:$0xff]
  %v459 = vld [vmem:[%s2 + $0x18] sm:$0xff]
  %v460 = vlaneseq
  %v461 = vshrl.u32 %v460, 7
  %v462 = vsub.s32 3, %v461
  %v463 = vrot.slane %v41, %v462
  %v465 = vsel %vm318, %v448, 0
  %v468 = vsel %vm318, %v449, 0
  %v471 = vsel %vm318, %v450, 0
  %v474 = vsel %vm318, %v451, 0
  %v477 = vsel %vm318, %v452, 0
  %v480 = vsel %vm318, %v453, 0
  %v483 = vsel %vm318, %v454, 0
  %v486 = vsel %vm318, %v455, 0
  %488 = vmatprep.subr.mxu0 0.0
  %489 = vmatpush1.msra.mxu0 %v456
  %490 = vmatprep.subr.mxu0 0.0
  %491 = vmatpush1.msra.mxu0 %v457
  %492 = vmatprep.subr.mxu0 0.0
  %493 = vmatpush1.msra.mxu0 %v458
  %494 = vmatprep.subr.mxu0 0.0
  %495 = vmatpush1.msra.mxu0 %v459
  %496 = vmatprep.subr.mxu0 0.0
  %497 = vmatpush1.msra.mxu0 0.0
  %498 = vmatprep.subr.mxu0 0.0
  %499 = vmatpush1.msra.mxu0 0.0
  %500 = vmatprep.subr.mxu0 0.0
  %501 = vmatpush1.msra.mxu0 0.0
  %502 = vmatprep.subr.mxu0 0.0
  %503 = vmatpush1.msra.mxu0 0.0
  %504 = vmatprep.subr.mxu0 0.0
  %505 = vmatpush1.msra.mxu0 0.0
  %506 = vmatprep.subr.mxu0 0.0
  %507 = vmatpush1.msra.mxu0 0.0
  %508 = vmatprep.subr.mxu0 0.0
  %509 = vmatpush1.msra.mxu0 0.0
  %510 = vmatprep.subr.mxu0 0.0
  %511 = vmatpush1.msra.mxu0 0.0
  %512 = vmatprep.subr.mxu0 0.0
  %513 = vmatpush1.msra.mxu0 0.0
  %514 = vmatprep.subr.mxu0 0.0
  %515 = vmatpush1.msra.mxu0 0.0
  %516 = vmatprep.subr.mxu0 0.0
  %517 = vmatpush1.msra.mxu0 0.0
  %518 = vmatprep.subr.mxu0 0.0
  %519 = vmatpush1.msra.mxu0 0.0
  %520 = vmatprep.subr.mxu0 0.0
  %521 = vmatpush1.msra.mxu0 0.0
  %522 = vmatprep.subr.mxu0 0.0
  %523 = vmatpush1.msra.mxu0 0.0
  %524 = vmatprep.subr.mxu0 0.0
  %525 = vmatpush1.msra.mxu0 0.0
  %526 = vmatprep.subr.mxu0 0.0
  %527 = vmatpush1.msra.mxu0 0.0
  %528 = vmatprep.subr.mxu0 0.0
  %529 = vmatpush1.msra.mxu0 0.0
  %530 = vmatprep.subr.mxu0 0.0
  %531 = vmatpush1.msra.mxu0 0.0
  %532 = vmatprep.subr.mxu0 0.0
  %533 = vmatpush1.msra.mxu0 0.0
  %534 = vmatprep.subr.mxu0 0.0
  %535 = vmatpush1.msra.mxu0 0.0
  %536 = vmatprep.subr.mxu0 0.0
  %537 = vmatpush1.msra.mxu0 0.0
  %538 = vmatprep.subr.mxu0 0.0
  %539 = vmatpush1.msra.mxu0 0.0
  %540 = vmatprep.subr.mxu0 0.0
  %541 = vmatpush1.msra.mxu0 0.0
  %542 = vmatprep.subr.mxu0 0.0
  %543 = vmatpush1.msra.mxu0 0.0
  %544 = vmatprep.subr.mxu0 0.0
  %545 = vmatpush1.msra.mxu0 0.0
  %546 = vmatprep.subr.mxu0 0.0
  %547 = vmatpush1.msra.mxu0 0.0
  %548 = vmatprep.subr.mxu0 0.0
  %549 = vmatpush1.msra.mxu0 0.0
  %550 = vmatprep.subr.mxu0 0.0
  %551 = vmatpush1.msra.mxu0 0.0
  %552 = vmatprep.mubr.f32.mxu0 0.0
  %553 = vmatmul.mubr.f32.gmra.mrb[0].mxu0 %v465
  %v554 = vpop.f32.mrb[0].mxu0
  %v555 = vadd.f32 %v463, %v554
  %v556 = vpop.f32.mrb[0].mxu0
  %557 = vmatprep.mubr.f32.mxu0 0.0
  %558 = vmatmul.mubr.f32.gmra.mrb[0].mxu0 %v468
  %v559 = vpop.f32.mrb[0].mxu0
  %v560 = vadd.f32 %v463, %v559
  %v561 = vpop.f32.mrb[0].mxu0
  %562 = vmatprep.mubr.f32.mxu0 0.0
  %563 = vmatmul.mubr.f32.gmra.mrb[0].mxu0 %v471
  %v564 = vpop.f32.mrb[0].mxu0
  %v565 = vadd.f32 %v463, %v564
  %v566 = vpop.f32.mrb[0].mxu0
  %567 = vmatprep.mubr.f32.mxu0 0.0
  %568 = vmatmul.mubr.f32.gmra.mrb[0].mxu0 %v474
  %v569 = vpop.f32.mrb[0].mxu0
  %v570 = vadd.f32 %v463, %v569
  %v571 = vpop.f32.mrb[0].mxu0
  %572 = vmatprep.mubr.f32.mxu0 0.0
  %573 = vmatmul.mubr.f32.gmra.mrb[0].mxu0 %v477
  %v574 = vpop.f32.mrb[0].mxu0
  %v575 = vadd.f32 %v463, %v574
  %v576 = vpop.f32.mrb[0].mxu0
  %577 = vmatprep.mubr.f32.mxu0 0.0
  %578 = vmatmul.mubr.f32.gmra.mrb[0].mxu0 %v480
  %v579 = vpop.f32.mrb[0].mxu0
  %v580 = vadd.f32 %v463, %v579
  %v581 = vpop.f32.mrb[0].mxu0
  %582 = vmatprep.mubr.f32.mxu0 0.0
  %583 = vmatmul.mubr.f32.gmra.mrb[0].mxu0 %v483
  %v584 = vpop.f32.mrb[0].mxu0
  %v585 = vadd.f32 %v463, %v584
  %v586 = vpop.f32.mrb[0].mxu0
  %587 = vmatprep.mubr.f32.mxu0 0.0
  %588 = vmatmul.mubr.f32.gmra.mrb[0].mxu0 %v486
  %v589 = vpop.f32.mrb[0].mxu0
  %v590 = vadd.f32 %v463, %v589
  %v591 = vpop.f32.mrb[0].mxu0
  %592 = vdwg.mxu0
  %v593 = vand.u32 2147483647, %v555
  %v594 = vand.u32 2147483647, %v560
  %v595 = vand.u32 2147483647, %v565
  %v596 = vand.u32 2147483647, %v570
  %v597 = vand.u32 2147483647, %v575
  %v598 = vand.u32 2147483647, %v580
  %v599 = vand.u32 2147483647, %v585
  %v600 = vand.u32 2147483647, %v590
  %v601 = vsub.f32 0.0, %v593
  %v602 = vsub.f32 0.0, %v594
  %v603 = vsub.f32 0.0, %v595
  %v604 = vsub.f32 0.0, %v596
  %v605 = vsub.f32 0.0, %v597
  %v606 = vsub.f32 0.0, %v598
  %v607 = vsub.f32 0.0, %v599
  %v608 = vsub.f32 0.0, %v600
  %v609 = vmul.f32 %v601, 1.442695
  %v610 = vpow.pop %v609
  %v611 = vmul.f32 %v602, 1.442695
  %v612 = vpow.pop %v611
  %v613 = vmul.f32 %v603, 1.442695
  %v614 = vpow.pop %v613
  %v615 = vmul.f32 %v604, 1.442695
  %v616 = vpow.pop %v615
  %v617 = vmul.f32 %v605, 1.442695
  %v618 = vpow.pop %v617
  %v619 = vmul.f32 %v606, 1.442695
  %v620 = vpow.pop %v619
  %v621 = vmul.f32 %v607, 1.442695
  %v622 = vpow.pop %v621
  %v623 = vmul.f32 %v608, 1.442695
  %v624 = vpow.pop %v623
  %v625 = vadd.f32 %v610, 1.0
  %v626 = vadd.f32 %v612, 1.0
  %v627 = vadd.f32 %v614, 1.0
  %v628 = vadd.f32 %v616, 1.0
  %v629 = vadd.f32 %v618, 1.0
  %v630 = vadd.f32 %v620, 1.0
  %v631 = vadd.f32 %v622, 1.0
  %v632 = vadd.f32 %v624, 1.0
  %vm633 = vcmp.ge.f32.partialorder %v555, 0.0
  %vm634 = vcmp.ge.f32.partialorder %v560, 0.0
  %vm635 = vcmp.ge.f32.partialorder %v565, 0.0
  %vm636 = vcmp.ge.f32.partialorder %v570, 0.0
  %vm637 = vcmp.ge.f32.partialorder %v575, 0.0
  %vm638 = vcmp.ge.f32.partialorder %v580, 0.0
  %vm639 = vcmp.ge.f32.partialorder %v585, 0.0
  %vm640 = vcmp.ge.f32.partialorder %v590, 0.0
  %v641 = vsel %vm633, 1.0, %v610
  %v642 = vsel %vm634, 1.0, %v612
  %v643 = vsel %vm635, 1.0, %v614
  %v644 = vsel %vm636, 1.0, %v616
  %v645 = vsel %vm637, 1.0, %v618
  %v646 = vsel %vm638, 1.0, %v620
  %v647 = vsel %vm639, 1.0, %v622
  %v648 = vsel %vm640, 1.0, %v624
  %v649 = vrcp.pop %v625
  %v650 = vmul.f32 %v641, %v649
  %v651 = vrcp.pop %v626
  %v652 = vmul.f32 %v642, %v651
  %v653 = vrcp.pop %v627
  %v654 = vmul.f32 %v643, %v653
  %v655 = vrcp.pop %v628
  %v656 = vmul.f32 %v644, %v655
  %v657 = vrcp.pop %v629
  %v658 = vmul.f32 %v645, %v657
  %v659 = vrcp.pop %v630
  %v660 = vmul.f32 %v646, %v659
  %v661 = vrcp.pop %v631
  %v662 = vmul.f32 %v647, %v661
  %v663 = vrcp.pop %v632
  %v664 = vmul.f32 %v648, %v663
  %v665 = vmax.f32 %v555, 0.0
  %v666 = vmax.f32 %v560, 0.0
  %v667 = vmax.f32 %v565, 0.0
  %v668 = vmax.f32 %v570, 0.0
  %v669 = vmax.f32 %v575, 0.0
  %v670 = vmax.f32 %v580, 0.0
  %v671 = vmax.f32 %v585, 0.0
  %v672 = vmax.f32 %v590, 0.0
  %v673 = vadd.f32 %v610, 1.0
  %v674 = vlog2.pop %v673
  %v675 = vmul.f32 %v674, 0.6931472
  %v676 = vmul.f32 -0.5, %v610
  %v677 = vadd.f32 %v676, 1.0
  %v678 = vmul.f32 %v677, %v610
  %v679 = vand.u32 2147483647, %v610
  %vm680 = vcmp.lt.f32.partialorder %v679, 0.0004427343
  %v681 = vsel %vm680, %v678, %v675
  %v682 = vadd.f32 %v612, 1.0
  %v683 = vlog2.pop %v682
  %v684 = vmul.f32 %v683, 0.6931472
  %v685 = vmul.f32 -0.5, %v612
  %v686 = vadd.f32 %v685, 1.0
  %v687 = vmul.f32 %v686, %v612
  %v688 = vand.u32 2147483647, %v612
  %vm689 = vcmp.lt.f32.partialorder %v688, 0.0004427343
  %v690 = vsel %vm689, %v687, %v684
  %v691 = vadd.f32 %v614, 1.0
  %v692 = vlog2.pop %v691
  %v693 = vmul.f32 %v692, 0.6931472
  %v694 = vmul.f32 -0.5, %v614
  %v695 = vadd.f32 %v694, 1.0
  %v696 = vmul.f32 %v695, %v614
  %v697 = vand.u32 2147483647, %v614
  %vm698 = vcmp.lt.f32.partialorder %v697, 0.0004427343
  %v699 = vsel %vm698, %v696, %v693
  %v700 = vadd.f32 %v616, 1.0
  %v701 = vlog2.pop %v700
  %v702 = vmul.f32 %v701, 0.6931472
  %v703 = vmul.f32 -0.5, %v616
  %v704 = vadd.f32 %v703, 1.0
  %v705 = vmul.f32 %v704, %v616
  %v706 = vand.u32 2147483647, %v616
  %vm707 = vcmp.lt.f32.partialorder %v706, 0.0004427343
  %v708 = vsel %vm707, %v705, %v702
  %v709 = vadd.f32 %v618, 1.0
  %v710 = vlog2.pop %v709
  %v711 = vmul.f32 %v710, 0.6931472
  %v712 = vmul.f32 -0.5, %v618
  %v713 = vadd.f32 %v712, 1.0
  %v714 = vmul.f32 %v713, %v618
  %v715 = vand.u32 2147483647, %v618
  %vm716 = vcmp.lt.f32.partialorder %v715, 0.0004427343
  %v717 = vsel %vm716, %v714, %v711
  %v718 = vadd.f32 %v620, 1.0
  %v719 = vlog2.pop %v718
  %v720 = vmul.f32 %v719, 0.6931472
  %v721 = vmul.f32 -0.5, %v620
  %v722 = vadd.f32 %v721, 1.0
  %v723 = vmul.f32 %v722, %v620
  %v724 = vand.u32 2147483647, %v620
  %vm725 = vcmp.lt.f32.partialorder %v724, 0.0004427343
  %v726 = vsel %vm725, %v723, %v720
  %v727 = vadd.f32 %v622, 1.0
  %v728 = vlog2.pop %v727
  %v729 = vmul.f32 %v728, 0.6931472
  %v730 = vmul.f32 -0.5, %v622
  %v731 = vadd.f32 %v730, 1.0
  %v732 = vmul.f32 %v731, %v622
  %v733 = vand.u32 2147483647, %v622
  %vm734 = vcmp.lt.f32.partialorder %v733, 0.0004427343
  %v735 = vsel %vm734, %v732, %v729
  %v736 = vadd.f32 %v624, 1.0
  %v737 = vlog2.pop %v736
  %v738 = vmul.f32 %v737, 0.6931472
  %v739 = vmul.f32 -0.5, %v624
  %v740 = vadd.f32 %v739, 1.0
  %v741 = vmul.f32 %v740, %v624
  %v742 = vand.u32 2147483647, %v624
  %vm743 = vcmp.lt.f32.partialorder %v742, 0.0004427343
  %v744 = vsel %vm743, %v741, %v738
  %v745 = vadd.f32 %v665, %v681
  %v746 = vadd.f32 %v666, %v690
  %v747 = vadd.f32 %v667, %v699
  %v748 = vadd.f32 %v668, %v708
  %v749 = vadd.f32 %v669, %v717
  %v750 = vadd.f32 %v670, %v726
  %v751 = vadd.f32 %v671, %v735
  %v752 = vadd.f32 %v672, %v744
  %v753 = vlaneseq
  %v754 = vand.u32 %v753, 127
  %vm755 = vcmp.eq.s32.totalorder %v754, 0
  %vm756 = vcmp.eq.s32.totalorder %v754, 1
  %v757 = vadd.f32 %v745, 1.0
  %v758 = vadd.f32 %v746, 1.0
  %v759 = vadd.f32 %v747, 1.0
  %v760 = vadd.f32 %v748, 1.0
  %v761 = vadd.f32 %v749, 1.0
  %v762 = vadd.f32 %v750, 1.0
  %v763 = vadd.f32 %v751, 1.0
  %v764 = vadd.f32 %v752, 1.0
  %vm765 = vcmp.lt.s32.totalorder %v754, 6
  %vm766 = vcmp.eq.s32.totalorder %v754, 6
  %v767 = vmul.f32 %v650, 2.0
  %v768 = vmul.f32 %v652, 2.0
  %v769 = vmul.f32 %v654, 2.0
  %v770 = vmul.f32 %v656, 2.0
  %v771 = vmul.f32 %v658, 2.0
  %v772 = vmul.f32 %v660, 2.0
  %v773 = vmul.f32 %v662, 2.0
  %v774 = vmul.f32 %v664, 2.0
  %v775 = vsel %vm766, %v767, 0.0
  %v776 = vsel %vm766, %v768, 0.0
  %v777 = vsel %vm766, %v769, 0.0
  %v778 = vsel %vm766, %v770, 0.0
  %v779 = vsel %vm766, %v771, 0.0
  %v780 = vsel %vm766, %v772, 0.0
  %v781 = vsel %vm766, %v773, 0.0
  %v782 = vsel %vm766, %v774, 0.0
  %v783 = vsel %vm765, %v745, %v775
  %v784 = vsel %vm765, %v746, %v776
  %v785 = vsel %vm765, %v747, %v777
  %v786 = vsel %vm765, %v748, %v778
  %v787 = vsel %vm765, %v749, %v779
  %v788 = vsel %vm765, %v750, %v780
  %v789 = vsel %vm765, %v751, %v781
  %v790 = vsel %vm765, %v752, %v782
  %v791 = vsel %vm756, %v757, %v783
  %v792 = vsel %vm756, %v758, %v784
  %v793 = vsel %vm756, %v759, %v785
  %v794 = vsel %vm756, %v760, %v786
  %v795 = vsel %vm756, %v761, %v787
  %v796 = vsel %vm756, %v762, %v788
  %v797 = vsel %vm756, %v763, %v789
  %v798 = vsel %vm756, %v764, %v790
  %v799 = vsel %vm755, %v650, %v791
  %v800 = vsel %vm755, %v652, %v792
  %v801 = vsel %vm755, %v654, %v793
  %v802 = vsel %vm755, %v656, %v794
  %v803 = vsel %vm755, %v658, %v795
  %v804 = vsel %vm755, %v660, %v796
  %v805 = vsel %vm755, %v662, %v797
  %v806 = vsel %vm755, %v664, %v798
  %vm807 = vcmask 130048
  %808 = vst.msk [vmem:[%s4] sm:$0xff] %vm807, %v799
  %809 = vst.msk [vmem:[%s4 + $0x8] sm:$0xff] %vm807, %v800
  %810 = vst.msk [vmem:[%s4 + $0x10] sm:$0xff] %vm807, %v801
  %811 = vst.msk [vmem:[%s4 + $0x18] sm:$0xff] %vm807, %v802
  %812 = vst.msk [vmem:[%s4 + $0x20] sm:$0xff] %vm807, %v803
  %813 = vst.msk [vmem:[%s4 + $0x28] sm:$0xff] %vm807, %v804
  %814 = vst.msk [vmem:[%s4 + $0x30] sm:$0xff] %vm807, %v805
  %815 = vst.msk [vmem:[%s4 + $0x38] sm:$0xff] %vm807, %v806
  // Predicated region
  $region18: #{meta_controller_forward.1} parent=0 // pred_check
    _
  $region19: #{meta_controller_forward.1} parent=0 // pred_check_branch
    %817 = sbr.rel (0) target = $region21
  $region20: #{meta_controller_forward.1} parent=0 // pred_region
    _
  $region21: #{meta_controller_forward.1} parent=0 // pred_fallthru
    _
  // Predicated region
  $region22: #{meta_controller_forward.1} parent=0 // pred_check
    _
  $region23: #{meta_controller_forward.1} parent=0 // pred_check_branch
    %819 = sbr.rel (0) target = $region25
  $region24: #{meta_controller_forward.1} parent=0 // pred_region
    _
  $region25: #{meta_controller_forward.1} parent=0 // pred_fallthru
    _

</llo_original>
